<compile_context>
chip_gen: v6e
topology: v6e:2x2x1
jax: 0.10.0
libtpu: 0.0.40
codegen_flags: <defaults>
</compile_context>

<pallas_src>
import functools

import jax
import jax.numpy as jnp
from jax.experimental import pallas as pl
from jax.experimental.pallas import tpu as pltpu

_MiB = 1024 * 1024


def classifier_head_kernel(hs_ref, w1_ref, b1_ref, w2_ref, b2_ref, w3_ref, b3_ref,
                           out_ref, acc_ref, *, seq_len, structured):
    """hs_ref: [TB, TS, H]  w1: [H, Dh]  w2: [Dh, Dh]  w3: [Dh, C]  acc_ref: [TB, 8|1, H] f32."""
    s_pid = pl.program_id(1)

    # Zero the per-batch-tile accumulator at the start of each sequence sweep.
    @pl.when(s_pid == 0)
    def _():
        acc_ref[...] = jnp.zeros_like(acc_ref)

    # Stream the (typically bf16) hidden tile; accumulate the sequence sum in f32.
    hs_tile = hs_ref[...].astype(jnp.float32)                       # [TB, TS, H]
    tb, ts, h = hs_tile.shape
    if structured:
        # Sublane-structured partial sum: collapse the TS//8 groups with pure vreg (VPU)
        # adds; the cross-sublane (XLU) reduce is deferred to the finalize step.
        acc_ref[...] += jnp.sum(hs_tile.reshape(tb, ts // 8, 8, h), axis=1)
    else:
        # Awkward TS (not a multiple of 8, single full-sequence block): plain reduce.
        acc_ref[...] += jnp.sum(hs_tile, axis=1, keepdims=True)

    # Finalize: mean + 3-layer MLP, only on the last sequence step.
    @pl.when(s_pid == pl.num_programs(1) - 1)
    def _():
        pooled = jnp.sum(acc_ref[...], axis=1) * (1.0 / seq_len)    # [TB, H], mean over S

        # fc1 + ReLU   (dropout p=0.2 -> identity in eval mode)
        x = jnp.dot(pooled, w1_ref[...], preferred_element_type=jnp.float32) + b1_ref[...]
        x = jnp.maximum(x, 0.0)
        # fc2 + ReLU   (dropout -> identity)
        x = jnp.dot(x, w2_ref[...], preferred_element_type=jnp.float32) + b2_ref[...]
        x = jnp.maximum(x, 0.0)
        # fc3 -> logits
        logits = jnp.dot(x, w3_ref[...], preferred_element_type=jnp.float32) + b3_ref[...]
        out_ref[...] = logits.astype(out_ref.dtype)


def _vmem_capacity_bytes():
    try:
        return int(pltpu.get_tpu_info().vmem_capacity_bytes)
    except Exception:
        return 64 * _MiB  # conservative default (v7x per-TensorCore physical VMEM)


def _seq_tile_candidates(S):
    # Multiple-of-8 divisors of S (sublane-aligned), ascending; else the full sequence
    # (block dim == full array dim is always legal).
    cands = [d for d in range(8, S + 1, 8) if S % d == 0]
    return cands if cands else [S]


def _batch_tile_candidates(B):
    # Batch tiles that keep the (tb, C) output block sublane-legal (multiple of 8, or the
    # full batch), preferring >= 2 batch blocks so both v7x TensorCores get work.
    cands = [t for t in (32, 16, 8) if B % t == 0 and B // t >= 2]
    cands.append(B)
    return cands
    # TODO(synk): for B == 1 (single batch block) the seq reduction could be split across
    # the two v7x TensorCores with per-core partial sums; not implemented here.


def _pick_tiles(B, S, H, itemsize, hidden_budget_bytes):
    ts_cands = _seq_tile_candidates(S)
    tb_cands = _batch_tile_candidates(B)

    def fits(tb_, ts_):
        # Double-buffered hidden-state tile must fit the remaining budget.
        return 2 * tb_ * ts_ * H * itemsize <= hidden_budget_bytes

    for tb in tb_cands:
        fitting = [c for c in ts_cands if fits(tb, c)]
        if fitting:
            return tb, fitting[-1]
    # Last resort: smallest legal tiles (soft budget exceeded; compiler headroom remains).
    return min(tb_cands), ts_cands[0]


def sentiment_classifier_head(last_hidden_state, params, *, tb=None, ts=None):
    """last_hidden_state: [B, S, H] (bf16 recommended for bandwidth). params: w1,b1,w2,b2,w3,b3."""
    B, S, H = last_hidden_state.shape
    Dh = params["w1"].shape[1]
    C = params["w3"].shape[1]

    itemsize = last_hidden_state.dtype.itemsize
    weight_bytes = sum(int(p.size) * p.dtype.itemsize for p in params.values())

    # Per-chip scoped VMEM budget: ~75% of physical VMEM, capped at 100 MiB.
    # (v7x: 64 MiB physical -> 48 MiB; v5e/v6e: 128 MiB physical -> 96 MiB.)
    vmem_limit = min(_vmem_capacity_bytes() * 3 // 4, 100 * _MiB)

    if tb is None or ts is None:
        acc_bytes_ub = 32 * 8 * H * 4                 # f32 accumulator (upper bound on tb)
        out_bytes_ub = 2 * 32 * max(C, 128) * 4       # output block (double-buffered, ub)
        hidden_budget = vmem_limit - weight_bytes - acc_bytes_ub - out_bytes_ub - 2 * _MiB
        auto_tb, auto_ts = _pick_tiles(B, S, H, itemsize, max(hidden_budget, 0))
        tb = auto_tb if tb is None else tb
        ts = auto_ts if ts is None else ts

    assert B % tb == 0 and (tb % 8 == 0 or tb == B), (B, tb)
    assert S % ts == 0 and (ts % 8 == 0 or ts == S), (S, ts)

    structured = (ts % 8 == 0)
    acc_rows = 8 if structured else 1
    grid = (B // tb, S // ts)

    kernel = functools.partial(classifier_head_kernel, seq_len=S, structured=structured)

    # Weights/biases: full arrays, constant index map, single-buffered -> DMA'd once,
    # resident across all grid steps with no wasted double-buffer VMEM.
    def const_spec(shape):
        return pl.BlockSpec(shape, lambda b, s: (0, 0),
                            pipeline_mode=pl.Buffered(buffer_count=1))

    cost = pl.CostEstimate(
        flops=2 * B * (H * Dh + Dh * Dh + Dh * C),
        transcendentals=0,
        bytes_accessed=B * S * H * itemsize + weight_bytes + B * C * 4,
    )

    return pl.pallas_call(
        kernel,
        out_shape=jax.ShapeDtypeStruct((B, C), jnp.float32),
        grid=grid,
        in_specs=[
            pl.BlockSpec((tb, ts, H), lambda b, s: (b, s, 0)),   # streamed hidden state
            const_spec((H, Dh)), const_spec((1, Dh)),
            const_spec((Dh, Dh)), const_spec((1, Dh)),
            const_spec((Dh, C)), const_spec((1, C)),
        ],
        # Output block constant across the seq axis -> resident, written once (last step).
        out_specs=pl.BlockSpec((tb, C), lambda b, s: (b, 0)),
        scratch_shapes=[pltpu.VMEM((tb, acc_rows, H), jnp.float32)],
        compiler_params=pltpu.CompilerParams(
            dimension_semantics=("parallel", "arbitrary"),
            vmem_limit_bytes=int(vmem_limit)),
        cost_estimate=cost,
    )(
        last_hidden_state,
        params["w1"], params["b1"],
        params["w2"], params["b2"],
        params["w3"], params["b3"],
    )


def init_params(key, hidden_size, hidden_dim, num_classes):
    ks = jax.random.split(key, 6)
    s1 = 1.0 / jnp.sqrt(hidden_size)
    s2 = 1.0 / jnp.sqrt(hidden_dim)
    u = lambda k, shape, s: jax.random.uniform(k, shape, jnp.float32, -1, 1) * s
    return {
        "w1": u(ks[0], (hidden_size, hidden_dim), s1),
        "b1": u(ks[1], (1, hidden_dim), s1),
        "w2": u(ks[2], (hidden_dim, hidden_dim), s2),
        "b2": u(ks[3], (1, hidden_dim), s2),
        "w3": u(ks[4], (hidden_dim, num_classes), s2),
        "b3": u(ks[5], (1, num_classes), s2),
    }


def reference_head(last_hidden_state, params):
    hp = jax.lax.Precision.HIGHEST
    pooled = jnp.mean(last_hidden_state.astype(jnp.float32), axis=1)
    x = jax.nn.relu(jnp.dot(pooled, params["w1"], precision=hp) + params["b1"])
    x = jax.nn.relu(jnp.dot(x, params["w2"], precision=hp) + params["b2"])
    return jnp.dot(x, params["w3"], precision=hp) + params["b3"]


if __name__ == "__main__":
    # Small synthetic shapes (the real BERT encoder is external; see TODO above).
    B, S, H = 4, 48, 64      # batch, seq, bert hidden_size
    Dh, C = 32, 3            # classifier hidden_dim, num_classes

    key = jax.random.PRNGKey(0)
    k_hs, k_hs2, k_params = jax.random.split(key, 3)
    params = init_params(k_params, H, Dh, C)

    # Stream the encoder output in bf16 (bandwidth-bound kernel); accumulation stays f32.
    hs = jax.random.normal(k_hs, (B, S, H), jnp.float32).astype(jnp.bfloat16)

    def check(hidden, **kw):
        out = jax.block_until_ready(sentiment_classifier_head(hidden, params, **kw))
        ref = reference_head(hidden, params)
        assert out.shape == ref.shape, (out.shape, ref.shape)
        err = jnp.max(jnp.abs(out - ref))
        assert jnp.allclose(out, ref, atol=2e-2, rtol=2e-2), f"max abs err {err}"

    check(hs)            # auto tiles (single seq step, sublane-structured accumulate)
    check(hs, ts=8)      # forced multi-step sequence reduction path
    hs_odd = jax.random.normal(k_hs2, (2, 12, H), jnp.float32).astype(jnp.bfloat16)
    check(hs_odd)        # awkward S (not a multiple of 8): full-sequence block path

    print("KERNEL_OK")
</pallas_src>

<mosaic_0001>
module attributes {stable_mosaic.version = 11 : i64} {
  func.func @classifier_head_kernel(%arg0: i32, %arg1: i32, %arg2: memref<4x48x64xbf16, #tpu.memory_space<vmem>>, %arg3: memref<64x32xf32, #tpu.memory_space<vmem>>, %arg4: memref<1x32xf32, #tpu.memory_space<vmem>>, %arg5: memref<32x32xf32, #tpu.memory_space<vmem>>, %arg6: memref<1x32xf32, #tpu.memory_space<vmem>>, %arg7: memref<32x3xf32, #tpu.memory_space<vmem>>, %arg8: memref<1x3xf32, #tpu.memory_space<vmem>>, %arg9: memref<4x3xf32, #tpu.memory_space<vmem>>, %arg10: memref<4x8x64xf32, #tpu.memory_space<vmem>>) attributes {dimension_semantics = [#tpu.dimension_semantics<parallel>, #tpu.dimension_semantics<arbitrary>], iteration_bounds = array<i64: 1, 1>, scalar_prefetch = 0 : i64, scratch_operands = 1 : i64, tpu.core_type = #tpu.core_type<tc>, window_params = [{transform_indices = @transform_0, window_bounds = array<i64: 4, 48, 64>}, {pipeline_mode = #tpu.pipeline_mode<synchronous>, transform_indices = @transform_1, window_bounds = array<i64: 64, 32>}, {pipeline_mode = #tpu.pipeline_mode<synchronous>, transform_indices = @transform_2, window_bounds = array<i64: 1, 32>}, {pipeline_mode = #tpu.pipeline_mode<synchronous>, transform_indices = @transform_3, window_bounds = array<i64: 32, 32>}, {pipeline_mode = #tpu.pipeline_mode<synchronous>, transform_indices = @transform_4, window_bounds = array<i64: 1, 32>}, {pipeline_mode = #tpu.pipeline_mode<synchronous>, transform_indices = @transform_5, window_bounds = array<i64: 32, 3>}, {pipeline_mode = #tpu.pipeline_mode<synchronous>, transform_indices = @transform_6, window_bounds = array<i64: 1, 3>}, {transform_indices = @transform_7, window_bounds = array<i64: 4, 3>}]} {
    %c0_i32 = arith.constant 0 : i32
    %0 = arith.cmpi eq, %arg1, %c0_i32 : i32
    %1 = arith.extui %0 : i1 to i32
    %c0_i32_0 = arith.constant 0 : i32
    %2 = arith.cmpi ne, %1, %c0_i32_0 : i32
    scf.if %2 {
      %cst_11 = arith.constant 0.000000e+00 : f32
      %13 = vector.broadcast %cst_11 : f32 to vector<4x8x64xf32>
      %c0_12 = arith.constant 0 : index
      %c0_13 = arith.constant 0 : index
      %c0_14 = arith.constant 0 : index
      %14 = vector.load %arg10[%c0_12, %c0_13, %c0_14] : memref<4x8x64xf32, #tpu.memory_space<vmem>>, vector<4x8x64xf32>
      tpu.vector_store %arg10[%c0_12, %c0_13, %c0_14], %13 {strides = array<i32>} : memref<4x8x64xf32, #tpu.memory_space<vmem>>, vector<4x8x64xf32>,
    } else {
    }
    %c0 = arith.constant 0 : index
    %c0_1 = arith.constant 0 : index
    %c0_2 = arith.constant 0 : index
    %3 = vector.load %arg2[%c0, %c0_1, %c0_2] : memref<4x48x64xbf16, #tpu.memory_space<vmem>>, vector<4x48x64xbf16>
    %4 = arith.extf %3 : vector<4x48x64xbf16> to vector<4x48x64xf32>
    %c0_3 = arith.constant 0 : index
    %c0_4 = arith.constant 0 : index
    %c0_5 = arith.constant 0 : index
    %5 = vector.load %arg10[%c0_3, %c0_4, %c0_5] : memref<4x8x64xf32, #tpu.memory_space<vmem>>, vector<4x8x64xf32>
    %6 = vector.shape_cast %4 : vector<4x48x64xf32> to vector<4x6x8x64xf32>
    %cst = arith.constant dense<0.000000e+00> : vector<4x8x64xf32>
    %7 = vector.multi_reduction <add>, %6, %cst [1] : vector<4x6x8x64xf32> to vector<4x8x64xf32>
    %8 = arith.addf %5, %7 : vector<4x8x64xf32>
    %c0_6 = arith.constant 0 : index
    %c0_7 = arith.constant 0 : index
    %c0_8 = arith.constant 0 : index
    %9 = vector.load %arg10[%c0_6, %c0_7, %c0_8] : memref<4x8x64xf32, #tpu.memory_space<vmem>>, vector<4x8x64xf32>
    tpu.vector_store %arg10[%c0_6, %c0_7, %c0_8], %8 {strides = array<i32>} : memref<4x8x64xf32, #tpu.memory_space<vmem>>, vector<4x8x64xf32>,
    %c0_i32_9 = arith.constant 0 : i32
    %10 = arith.cmpi eq, %arg1, %c0_i32_9 : i32
    %11 = arith.extui %10 : i1 to i32
    %c0_i32_10 = arith.constant 0 : i32
    %12 = arith.cmpi ne, %11, %c0_i32_10 : i32
    scf.if %12 {
      %c0_11 = arith.constant 0 : index
      %c0_12 = arith.constant 0 : index
      %c0_13 = arith.constant 0 : index
      %13 = vector.load %arg10[%c0_11, %c0_12, %c0_13] : memref<4x8x64xf32, #tpu.memory_space<vmem>>, vector<4x8x64xf32>
      %cst_14 = arith.constant dense<0.000000e+00> : vector<4x64xf32>
      %14 = vector.multi_reduction <add>, %13, %cst_14 [1] : vector<4x8x64xf32> to vector<4x64xf32>
      %cst_15 = arith.constant 0.020833334 : f32
      %15 = vector.broadcast %cst_15 : f32 to vector<4x64xf32>
      %16 = arith.mulf %14, %15 : vector<4x64xf32>
      %c0_16 = arith.constant 0 : index
      %c0_17 = arith.constant 0 : index
      %17 = vector.load %arg3[%c0_16, %c0_17] : memref<64x32xf32, #tpu.memory_space<vmem>>, vector<64x32xf32>
      %cst_18 = arith.constant dense<0.000000e+00> : vector<4x32xf32>
      %18 = tpu.matmul %16, %17, %cst_18 {dimension_numbers = #tpu.dot_dimension_numbers<[1], [0], [0], [1], [0, 0, 1, 1], [], []>} : vector<4x64xf32>, vector<64x32xf32>, vector<4x32xf32> -> vector<4x32xf32>
      %c0_19 = arith.constant 0 : index
      %c0_20 = arith.constant 0 : index
      %19 = vector.load %arg4[%c0_19, %c0_20] : memref<1x32xf32, #tpu.memory_space<vmem>>, vector<1x32xf32>
      %20 = vector.broadcast %19 : vector<1x32xf32> to vector<4x32xf32>
      %21 = arith.addf %18, %20 : vector<4x32xf32>
      %cst_21 = arith.constant 0.000000e+00 : f32
      %22 = vector.broadcast %cst_21 : f32 to vector<4x32xf32>
      %23 = arith.maximumf %21, %22 : vector<4x32xf32>
      %c0_22 = arith.constant 0 : index
      %c0_23 = arith.constant 0 : index
      %24 = vector.load %arg5[%c0_22, %c0_23] : memref<32x32xf32, #tpu.memory_space<vmem>>, vector<32x32xf32>
      %cst_24 = arith.constant dense<0.000000e+00> : vector<4x32xf32>
      %25 = tpu.matmul %23, %24, %cst_24 {dimension_numbers = #tpu.dot_dimension_numbers<[1], [0], [0], [1], [0, 0, 1, 1], [], []>} : vector<4x32xf32>, vector<32x32xf32>, vector<4x32xf32> -> vector<4x32xf32>
      %c0_25 = arith.constant 0 : index
      %c0_26 = arith.constant 0 : index
      %26 = vector.load %arg6[%c0_25, %c0_26] : memref<1x32xf32, #tpu.memory_space<vmem>>, vector<1x32xf32>
      %27 = vector.broadcast %26 : vector<1x32xf32> to vector<4x32xf32>
      %28 = arith.addf %25, %27 : vector<4x32xf32>
      %cst_27 = arith.constant 0.000000e+00 : f32
      %29 = vector.broadcast %cst_27 : f32 to vector<4x32xf32>
      %30 = arith.maximumf %28, %29 : vector<4x32xf32>
      %c0_28 = arith.constant 0 : index
      %c0_29 = arith.constant 0 : index
      %31 = vector.load %arg7[%c0_28, %c0_29] : memref<32x3xf32, #tpu.memory_space<vmem>>, vector<32x3xf32>
      %cst_30 = arith.constant dense<0.000000e+00> : vector<4x3xf32>
      %32 = tpu.matmul %30, %31, %cst_30 {dimension_numbers = #tpu.dot_dimension_numbers<[1], [0], [0], [1], [0, 0, 1, 1], [], []>} : vector<4x32xf32>, vector<32x3xf32>, vector<4x3xf32> -> vector<4x3xf32>
      %c0_31 = arith.constant 0 : index
      %c0_32 = arith.constant 0 : index
      %33 = vector.load %arg8[%c0_31, %c0_32] : memref<1x3xf32, #tpu.memory_space<vmem>>, vector<1x3xf32>
      %34 = vector.broadcast %33 : vector<1x3xf32> to vector<4x3xf32>
      %35 = arith.addf %32, %34 : vector<4x3xf32>
      %c0_33 = arith.constant 0 : index
      %c0_34 = arith.constant 0 : index
      %36 = vector.load %arg9[%c0_33, %c0_34] : memref<4x3xf32, #tpu.memory_space<vmem>>, vector<4x3xf32>
      tpu.vector_store %arg9[%c0_33, %c0_34], %35 {strides = array<i32>} : memref<4x3xf32, #tpu.memory_space<vmem>>, vector<4x3xf32>,
    } else {
    }
    return
  }
  func.func @transform_0(%arg0: i32, %arg1: i32) -> (i32, i32, i32) {
    %c0_i32 = arith.constant 0 : i32
    %c0_i32_0 = arith.constant 0 : i32
    return %arg0, %arg1, %c0_i32 : i32, i32, i32
  }
  func.func @transform_1(%arg0: i32, %arg1: i32) -> (i32, i32) {
    %c0_i32 = arith.constant 0 : i32
    %c0_i32_0 = arith.constant 0 : i32
    %c0_i32_1 = arith.constant 0 : i32
    return %c0_i32, %c0_i32_0 : i32, i32
  }
  func.func @transform_2(%arg0: i32, %arg1: i32) -> (i32, i32) {
    %c0_i32 = arith.constant 0 : i32
    %c0_i32_0 = arith.constant 0 : i32
    %c0_i32_1 = arith.constant 0 : i32
    return %c0_i32, %c0_i32_0 : i32, i32
  }
  func.func @transform_3(%arg0: i32, %arg1: i32) -> (i32, i32) {
    %c0_i32 = arith.constant 0 : i32
    %c0_i32_0 = arith.constant 0 : i32
    %c0_i32_1 = arith.constant 0 : i32
    return %c0_i32, %c0_i32_0 : i32, i32
  }
  func.func @transform_4(%arg0: i32, %arg1: i32) -> (i32, i32) {
    %c0_i32 = arith.constant 0 : i32
    %c0_i32_0 = arith.constant 0 : i32
    %c0_i32_1 = arith.constant 0 : i32
    return %c0_i32, %c0_i32_0 : i32, i32
  }
  func.func @transform_5(%arg0: i32, %arg1: i32) -> (i32, i32) {
    %c0_i32 = arith.constant 0 : i32
    %c0_i32_0 = arith.constant 0 : i32
    %c0_i32_1 = arith.constant 0 : i32
    return %c0_i32, %c0_i32_0 : i32, i32
  }
  func.func @transform_6(%arg0: i32, %arg1: i32) -> (i32, i32) {
    %c0_i32 = arith.constant 0 : i32
    %c0_i32_0 = arith.constant 0 : i32
    %c0_i32_1 = arith.constant 0 : i32
    return %c0_i32, %c0_i32_0 : i32, i32
  }
  func.func @transform_7(%arg0: i32, %arg1: i32) -> (i32, i32) {
    %c0_i32 = arith.constant 0 : i32
    %c0_i32_0 = arith.constant 0 : i32
    return %arg0, %c0_i32 : i32, i32
  }
}

</mosaic_0001>

<llo_original>
// kernel: tpu_custom_call.1
$region0: #{tpu_custom_call.1}
  #allocation0 [shape = 'u32[]', space=smem, size = 0x4, offset = 0x4, fixed_abs, tag = 'smem constant byte address 0x4 - core index']
  #allocation1 [shape = 'u32[144,128]{1,0:T(1,128)}', space=vmem, size = 0x12000, scoped, tag = 'internal scratch']
  #allocation2 [shape = 'f32[4,8,64]{2,1,0:T(8,128)}', space=vmem, size = 0x4000, scoped, tag = 'scratch operand']
  %s0 = inlined_call_operand.vmem [shape: bf16[4,48,64], index: 0, kind: input, shape index: {}]
  %s1 = inlined_call_operand.vmem [shape: f32[64,32], index: 1, kind: input, shape index: {}]
  %s2 = inlined_call_operand.vmem [shape: f32[1,32], index: 2, kind: input, shape index: {}]
  %s3 = inlined_call_operand.hbm [shape: f32[32,32], index: 3, kind: input, shape index: {}]
  %s4 = inlined_call_operand.vmem [shape: f32[1,32], index: 4, kind: input, shape index: {}]
  %s5 = inlined_call_operand.vmem [shape: f32[32,3], index: 5, kind: input, shape index: {}]
  %s6 = inlined_call_operand.vmem [shape: f32[1,3], index: 6, kind: input, shape index: {}]
  %s7 = inlined_call_operand.hbm [shape: f32[4,3], index: 7, kind: output, shape index: {}]
  %s8 = sld [smem:[#allocation0]]
  $region50: #{tpu_custom_call.1} parent=0
    _
  %s10 = ssub.s32 1, %s8
  %s11 = scalar_select 0, %s10, %s8
  $region1: #{tpu_custom_call.1} parent=0
    #allocation3 [shape = 'u8[16384]{0}', space=vmem, size = 0x4000, scoped, tag = 'input window, operand 3, single buffered']
    #allocation4 [shape = 's32[1]{0}', space=sflag, size = 0x4, scoped, tag = 'scoped memory for tpu_custom_call.1']
    #allocation5 [shape = 's32[1]{0}', space=sflag, size = 0x4, scoped, tag = 'scoped memory for tpu_custom_call.1']
    #allocation6 [shape = 'u8[2048]{0}', space=vmem, size = 0x800, scoped, tag = 'output window, operand 0, single buffered']
    %12 = vsyncpa [#allocation4], 0
    %13 = vsyncpa [#allocation5], 0
    // Predicated region
    $region2: #{tpu_custom_call.1} parent=1 // pred_check
      _
    $region3: #{tpu_custom_call.1} parent=1 // pred_check_branch
      %15 = sbr.rel (0) target = $region5
    $region4: #{tpu_custom_call.1} parent=1 // pred_region
      _
    $region5: #{tpu_custom_call.1} parent=1 // pred_fallthru
      _
    // Predicated region
    $region6: #{tpu_custom_call.1} parent=1 // pred_check
      _
    $region7: #{tpu_custom_call.1} parent=1 // pred_check_branch
      %17 = sbr.rel (0) target = $region9
    $region8: #{tpu_custom_call.1} parent=1 // pred_region
      _
    $region9: #{tpu_custom_call.1} parent=1 // pred_fallthru
      _
    // Predicated region
    $region10: #{tpu_custom_call.1} parent=1 // pred_check
      _
    $region11: #{tpu_custom_call.1} parent=1 // pred_check_branch
      %19 = sbr.rel (0) target = $region13
    $region12: #{tpu_custom_call.1} parent=1 // pred_region
      _
    $region13: #{tpu_custom_call.1} parent=1 // pred_fallthru
      _
    // Predicated region
    $region14: #{tpu_custom_call.1} parent=1 // pred_check
      _
    $region15: #{tpu_custom_call.1} parent=1 // pred_check_branch
      %21 = sbr.rel (0) target = $region17
    $region16: #{tpu_custom_call.1} parent=1 // pred_region
      %s23 = ssub.s32 512, 512
      %24 = vsyncadd [#allocation4], %s23
      %s25 = sshll.u32 [#allocation3], 4
      %s26 = int_to_ptr.vmem [resolvable:$true] %s25
      %31 = dma.hbm_to_vmem [thread:$0]  %s3, 512, %s26, [#allocation4], 128, 128, 8
    $region17: #{tpu_custom_call.1} parent=1 // pred_fallthru
      _
    // Predicated region
    $region18: #{tpu_custom_call.1} parent=1 // pred_check
      _
    $region19: #{tpu_custom_call.1} parent=1 // pred_check_branch
      %33 = sbr.rel (0) target = $region21
    $region20: #{tpu_custom_call.1} parent=1 // pred_region
      _
    $region21: #{tpu_custom_call.1} parent=1 // pred_fallthru
      _
    // Predicated region
    $region22: #{tpu_custom_call.1} parent=1 // pred_check
      _
    $region23: #{tpu_custom_call.1} parent=1 // pred_check_branch
      %35 = sbr.rel (0) target = $region25
    $region24: #{tpu_custom_call.1} parent=1 // pred_region
      _
    $region25: #{tpu_custom_call.1} parent=1 // pred_fallthru
      _
    // Predicated region
    $region26: #{tpu_custom_call.1} parent=1 // pred_check
      _
    $region27: #{tpu_custom_call.1} parent=1 // pred_check_branch
      %37 = sbr.rel (0) target = $region29
    $region28: #{tpu_custom_call.1} parent=1 // pred_region
      _
    $region29: #{tpu_custom_call.1} parent=1 // pred_fallthru
      _
    // Predicated region
    $region30: #{tpu_custom_call.1} parent=1 // pred_check
      _
    $region31: #{tpu_custom_call.1} parent=1 // pred_check_branch
      %39 = sbr.rel (0) target = $region33
    $region32: #{tpu_custom_call.1} parent=1 // pred_region
      %40 = dma.done [#allocation4], 512
    $region33: #{tpu_custom_call.1} parent=1 // pred_fallthru
      _
    %p41 = scmp.eq.s32.totalorder 0, 0
    // Predicated region
    $region34: #{tpu_custom_call.1} parent=1 // pred_check
      %p42 = pneg %p41
    $region35: #{tpu_custom_call.1} parent=1 // pred_check_branch
      %44 = sbr.rel (%p42) target = $region37
    $region36: #{tpu_custom_call.1} parent=1 // pred_region
      %vm45 = vcmask 523264
      %46 = vst.msk [vmem:[#allocation2] sm:$0xff] %vm45, 0.0
      %47 = vst.msk [vmem:[#allocation2 + $0x8] sm:$0xff] %vm45, 0.0
      %48 = vst.msk [vmem:[#allocation2 + $0x10] sm:$0xff] %vm45, 0.0
      %49 = vst.msk [vmem:[#allocation2 + $0x18] sm:$0xff] %vm45, 0.0
    $region37: #{tpu_custom_call.1} parent=1 // pred_fallthru
      _
    %v50 = vld [vmem:[%s0] sm:$0xf]
    %v51 = vld [vmem:[%s0 + $0x4] sm:$0xf]
    %v52 = vld [vmem:[%s0 + $0x8] sm:$0xf]
    %v53 = vld [vmem:[%s0 + $0xc] sm:$0xf]
    %v54 = vld [vmem:[%s0 + $0x10] sm:$0xf]
    %v55 = vld [vmem:[%s0 + $0x14] sm:$0xf]
    %v56 = vld [vmem:[%s0 + $0x18] sm:$0xf]
    %v57 = vld [vmem:[%s0 + $0x1c] sm:$0xf]
    %v58 = vld [vmem:[%s0 + $0x20] sm:$0xf]
    %v59 = vld [vmem:[%s0 + $0x24] sm:$0xf]
    %v60 = vld [vmem:[%s0 + $0x28] sm:$0xf]
    %v61 = vld [vmem:[%s0 + $0x2c] sm:$0xf]
    %v62 = vld [vmem:[%s0 + $0x30] sm:$0xf]
    %v63 = vld [vmem:[%s0 + $0x34] sm:$0xf]
    %v64 = vld [vmem:[%s0 + $0x38] sm:$0xf]
    %v65 = vld [vmem:[%s0 + $0x3c] sm:$0xf]
    %v66 = vld [vmem:[%s0 + $0x40] sm:$0xf]
    %v67 = vld [vmem:[%s0 + $0x44] sm:$0xf]
    %v68 = vld [vmem:[%s0 + $0x48] sm:$0xf]
    %v69 = vld [vmem:[%s0 + $0x4c] sm:$0xf]
    %v70 = vld [vmem:[%s0 + $0x50] sm:$0xf]
    %v71 = vld [vmem:[%s0 + $0x54] sm:$0xf]
    %v72 = vld [vmem:[%s0 + $0x58] sm:$0xf]
    %v73 = vld [vmem:[%s0 + $0x5c] sm:$0xf]
    %v74 = vunpack.c.l.bf16 %v50
    %v75 = vunpack.c.l.bf16 %v51
    %v76 = vunpack.c.l.bf16 %v52
    %v77 = vunpack.c.l.bf16 %v53
    %v78 = vunpack.c.l.bf16 %v54
    %v79 = vunpack.c.l.bf16 %v55
    %v80 = vunpack.c.l.bf16 %v56
    %v81 = vunpack.c.l.bf16 %v57
    %v82 = vunpack.c.l.bf16 %v58
    %v83 = vunpack.c.l.bf16 %v59
    %v84 = vunpack.c.l.bf16 %v60
    %v85 = vunpack.c.l.bf16 %v61
    %v86 = vunpack.c.l.bf16 %v62
    %v87 = vunpack.c.l.bf16 %v63
    %v88 = vunpack.c.l.bf16 %v64
    %v89 = vunpack.c.l.bf16 %v65
    %v90 = vunpack.c.l.bf16 %v66
    %v91 = vunpack.c.l.bf16 %v67
    %v92 = vunpack.c.l.bf16 %v68
    %v93 = vunpack.c.l.bf16 %v69
    %v94 = vunpack.c.l.bf16 %v70
    %v95 = vunpack.c.l.bf16 %v71
    %v96 = vunpack.c.l.bf16 %v72
    %v97 = vunpack.c.l.bf16 %v73
    %v98 = vld [vmem:[#allocation2] sm:$0xff]
    %v99 = vld [vmem:[#allocation2 + $0x8] sm:$0xff]
    %v100 = vld [vmem:[#allocation2 + $0x10] sm:$0xff]
    %v101 = vld [vmem:[#allocation2 + $0x18] sm:$0xff]
    %vm102 = vcmask 523264
    %v103 = vsel %vm102, %v74, 0.0
    %v104 = vsel %vm102, %v75, 0.0
    %v105 = vadd.f32 %v103, %v104
    %v106 = vsel %vm102, %v76, 0.0
    %v107 = vadd.f32 %v105, %v106
    %v108 = vsel %vm102, %v77, 0.0
    %v109 = vadd.f32 %v107, %v108
    %v110 = vsel %vm102, %v78, 0.0
    %v111 = vadd.f32 %v109, %v110
    %v112 = vsel %vm102, %v79, 0.0
    %v113 = vadd.f32 %v111, %v112
    %v114 = vsel %vm102, %v80, 0.0
    %v115 = vsel %vm102, %v81, 0.0
    %v116 = vadd.f32 %v114, %v115
    %v117 = vsel %vm102, %v82, 0.0
    %v118 = vadd.f32 %v116, %v117
    %v119 = vsel %vm102, %v83, 0.0
    %v120 = vadd.f32 %v118, %v119
    %v121 = vsel %vm102, %v84, 0.0
    %v122 = vadd.f32 %v120, %v121
    %v123 = vsel %vm102, %v85, 0.0
    %v124 = vadd.f32 %v122, %v123
    %v125 = vsel %vm102, %v86, 0.0
    %v126 = vsel %vm102, %v87, 0.0
    %v127 = vadd.f32 %v125, %v126
    %v128 = vsel %vm102, %v88, 0.0
    %v129 = vadd.f32 %v127, %v128
    %v130 = vsel %vm102, %v89, 0.0
    %v131 = vadd.f32 %v129, %v130
    %v132 = vsel %vm102, %v90, 0.0
    %v133 = vadd.f32 %v131, %v132
    %v134 = vsel %vm102, %v91, 0.0
    %v135 = vadd.f32 %v133, %v134
    %v136 = vsel %vm102, %v92, 0.0
    %v137 = vsel %vm102, %v93, 0.0
    %v138 = vadd.f32 %v136, %v137
    %v139 = vsel %vm102, %v94, 0.0
    %v140 = vadd.f32 %v138, %v139
    %v141 = vsel %vm102, %v95, 0.0
    %v142 = vadd.f32 %v140, %v141
    %v143 = vsel %vm102, %v96, 0.0
    %v144 = vadd.f32 %v142, %v143
    %v145 = vsel %vm102, %v97, 0.0
    %v146 = vadd.f32 %v144, %v145
    %v147 = vadd.f32 %v98, %v113
    %v148 = vadd.f32 %v99, %v124
    %v149 = vadd.f32 %v100, %v135
    %v150 = vadd.f32 %v101, %v146
    %151 = vst.msk [vmem:[#allocation2] sm:$0xff] %vm102, %v147
    %152 = vst.msk [vmem:[#allocation2 + $0x8] sm:$0xff] %vm102, %v148
    %153 = vst.msk [vmem:[#allocation2 + $0x10] sm:$0xff] %vm102, %v149
    %154 = vst.msk [vmem:[#allocation2 + $0x18] sm:$0xff] %vm102, %v150
    // Predicated region
    $region38: #{tpu_custom_call.1} parent=1 // pred_check
      %p155 = pneg %p41
    $region39: #{tpu_custom_call.1} parent=1 // pred_check_branch
      %157 = sbr.rel (%p155) target = $region41
    $region40: #{tpu_custom_call.1} parent=1 // pred_region
      %v158 = vld [vmem:[#allocation2] sm:$0xff]
      %v159 = vld [vmem:[#allocation2 + $0x8] sm:$0xff]
      %v160 = vld [vmem:[#allocation2 + $0x10] sm:$0xff]
      %v161 = vld [vmem:[#allocation2 + $0x18] sm:$0xff]
      %v162 = vsel %vm102, %v158, 0.0
      %v163 = vrot.slane %v162, 4
      %v164 = vadd.f32 %v162, %v163
      %v165 = vrot.slane %v164, 2
      %v166 = vadd.f32 %v164, %v165
      %v167 = vrot.slane %v166, 1
      %v168 = vadd.f32 %v166, %v167
      %v169 = vsel %vm102, %v159, 0.0
      %v170 = vrot.slane %v169, 4
      %v171 = vadd.f32 %v169, %v170
      %v172 = vrot.slane %v171, 2
      %v173 = vadd.f32 %v171, %v172
      %v174 = vrot.slane %v173, 1
      %v175 = vadd.f32 %v173, %v174
      %v176 = vsel %vm102, %v160, 0.0
      %v177 = vrot.slane %v176, 4
      %v178 = vadd.f32 %v176, %v177
      %v179 = vrot.slane %v178, 2
      %v180 = vadd.f32 %v178, %v179
      %v181 = vrot.slane %v180, 1
      %v182 = vadd.f32 %v180, %v181
      %v183 = vsel %vm102, %v161, 0.0
      %v184 = vrot.slane %v183, 4
      %v185 = vadd.f32 %v183, %v184
      %v186 = vrot.slane %v185, 2
      %v187 = vadd.f32 %v185, %v186
      %v188 = vrot.slane %v187, 1
      %v189 = vadd.f32 %v187, %v188
      %v190 = vmul.f32 %v168, 0.020833334
      %v191 = vmul.f32 %v175, 0.020833334
      %v192 = vmul.f32 %v182, 0.020833334
      %v193 = vmul.f32 %v189, 0.020833334
      %v194 = vld [vmem:[%s1] sm:$0xff]
      %v195 = vld [vmem:[%s1 + $0x8] sm:$0xff]
      %v196 = vld [vmem:[%s1 + $0x10] sm:$0xff]
      %v197 = vld [vmem:[%s1 + $0x18] sm:$0xff]
      %v198 = vld [vmem:[%s1 + $0x20] sm:$0xff]
      %v199 = vld [vmem:[%s1 + $0x28] sm:$0xff]
      %v200 = vld [vmem:[%s1 + $0x30] sm:$0xff]
      %v201 = vld [vmem:[%s1 + $0x38] sm:$0xff]
      %v202 = vld [vmem:[%s2] sm:$0x1]
      %v204 = vlaneseq
      %v205 = vshrl.u32 %v204, 7
      %v206 = vsub.s32 0, %v205
      %v207 = vrot.slane %v202, %v206
      %vm213 = vcmask 1041409
      %v214 = vsel %vm213, %v191, %v190
      %vm215 = vcmask 1042434
      %v216 = vsel %vm215, %v192, %v214
      %vm217 = vcmask 1043459
      %v218 = vsel %vm217, %v193, %v216
      %v219 = vsel %vm102, %v218, 0
      %221 = vmatprep.subr.mxu0 0.0
      %222 = vmatpush1.msra.mxu0 0.0
      %223 = vmatprep.subr.mxu0 0.0
      %224 = vmatpush1.msra.mxu0 0.0
      %225 = vmatprep.subr.mxu0 0.0
      %226 = vmatpush1.msra.mxu0 0.0
      %227 = vmatprep.subr.mxu0 0.0
      %228 = vmatpush1.msra.mxu0 0.0
      %229 = vmatprep.subr.mxu0 0.0
      %230 = vmatpush1.msra.mxu0 0.0
      %231 = vmatprep.subr.mxu0 0.0
      %232 = vmatpush1.msra.mxu0 0.0
      %233 = vmatprep.subr.mxu0 0.0
      %234 = vmatpush1.msra.mxu0 0.0
      %235 = vmatprep.subr.mxu0 0.0
      %236 = vmatpush1.msra.mxu0 0.0
      %237 = vmatprep.subr.mxu0 0.0
      %238 = vmatpush1.msra.mxu0 %v201
      %239 = vmatprep.subr.mxu0 0.0
      %240 = vmatpush1.msra.mxu0 %v200
      %241 = vmatprep.subr.mxu0 0.0
      %242 = vmatpush1.msra.mxu0 %v199
      %243 = vmatprep.subr.mxu0 0.0
      %244 = vmatpush1.msra.mxu0 %v198
      %245 = vmatprep.subr.mxu0 0.0
      %246 = vmatpush1.msra.mxu0 %v197
      %247 = vmatprep.subr.mxu0 0.0
      %248 = vmatpush1.msra.mxu0 %v196
      %249 = vmatprep.subr.mxu0 0.0
      %250 = vmatpush1.msra.mxu0 %v195
      %251 = vmatprep.subr.mxu0 0.0
      %252 = vmatpush1.msra.mxu0 %v194
      %253 = vmatprep.subr.mxu0 0.0
      %254 = vmatpush2.msra.mxu0 0.0
      %255 = vmatprep.subr.mxu0 0.0
      %256 = vmatpush2.msra.mxu0 0.0
      %257 = vmatprep.subr.mxu0 0.0
      %258 = vmatpush2.msra.mxu0 0.0
      %259 = vmatprep.subr.mxu0 0.0
      %260 = vmatpush2.msra.mxu0 0.0
      %261 = vmatprep.subr.mxu0 0.0
      %262 = vmatpush2.msra.mxu0 0.0
      %263 = vmatprep.subr.mxu0 0.0
      %264 = vmatpush2.msra.mxu0 0.0
      %265 = vmatprep.subr.mxu0 0.0
      %266 = vmatpush2.msra.mxu0 0.0
      %267 = vmatprep.subr.mxu0 0.0
      %268 = vmatpush2.msra.mxu0 0.0
      %269 = vmatprep.subr.mxu0 0.0
      %270 = vmatpush2.msra.mxu0 0.0
      %271 = vmatprep.subr.mxu0 0.0
      %272 = vmatpush2.msra.mxu0 0.0
      %273 = vmatprep.subr.mxu0 0.0
      %274 = vmatpush2.msra.mxu0 0.0
      %275 = vmatprep.subr.mxu0 0.0
      %276 = vmatpush2.msra.mxu0 0.0
      %277 = vmatprep.subr.mxu0 0.0
      %278 = vmatpush2.msra.mxu0 0.0
      %279 = vmatprep.subr.mxu0 0.0
      %280 = vmatpush2.msra.mxu0 0.0
      %281 = vmatprep.subr.mxu0 0.0
      %282 = vmatpush2.msra.mxu0 0.0
      %283 = vmatprep.subr.mxu0 0.0
      %284 = vmatpush2.msra.mxu0 0.0
      %285 = vmatprep.mubr.f32.mxu0 0.0
      %286 = vmatmul.mubr.f32.gmra.mxu0 %v219
      %v287 = vpop.f32.mrf.mxu0
      %v288 = vadd.f32 %v207, %v287
      %v289 = vpop.f32.mrf.mxu0
      %290 = vdwg.mxu0
      %v291 = vmax.f32 %v288, 0.0
      %v292 = vld [vmem:[#allocation3] sm:$0xff]
      %v293 = vld [vmem:[#allocation3 + $0x8] sm:$0xff]
      %v294 = vld [vmem:[#allocation3 + $0x10] sm:$0xff]
      %v295 = vld [vmem:[#allocation3 + $0x18] sm:$0xff]
      %v296 = vld [vmem:[%s4] sm:$0x1]
      %v298 = vlaneseq
      %v299 = vshrl.u32 %v298, 7
      %v300 = vsub.s32 0, %v299
      %v301 = vrot.slane %v296, %v300
      %vm303 = vcmask 261120
      %v305 = vsel %vm303, %v291, 0
      %307 = vmatprep.subr.mxu0 0.0
      %308 = vmatpush1.msra.mxu0 0.0
      %309 = vmatprep.subr.mxu0 0.0
      %310 = vmatpush1.msra.mxu0 0.0
      %311 = vmatprep.subr.mxu0 0.0
      %312 = vmatpush1.msra.mxu0 0.0
      %313 = vmatprep.subr.mxu0 0.0
      %314 = vmatpush1.msra.mxu0 0.0
      %315 = vmatprep.subr.mxu0 0.0
      %316 = vmatpush1.msra.mxu0 0.0
      %317 = vmatprep.subr.mxu0 0.0
      %318 = vmatpush1.msra.mxu0 0.0
      %319 = vmatprep.subr.mxu0 0.0
      %320 = vmatpush1.msra.mxu0 0.0
      %321 = vmatprep.subr.mxu0 0.0
      %322 = vmatpush1.msra.mxu0 0.0
      %323 = vmatprep.subr.mxu0 0.0
      %324 = vmatpush1.msra.mxu0 0.0
      %325 = vmatprep.subr.mxu0 0.0
      %326 = vmatpush1.msra.mxu0 0.0
      %327 = vmatprep.subr.mxu0 0.0
      %328 = vmatpush1.msra.mxu0 0.0
      %329 = vmatprep.subr.mxu0 0.0
      %330 = vmatpush1.msra.mxu0 0.0
      %331 = vmatprep.subr.mxu0 0.0
      %332 = vmatpush1.msra.mxu0 %v295
      %333 = vmatprep.subr.mxu0 0.0
      %334 = vmatpush1.msra.mxu0 %v294
      %335 = vmatprep.subr.mxu0 0.0
      %336 = vmatpush1.msra.mxu0 %v293
      %337 = vmatprep.subr.mxu0 0.0
      %338 = vmatpush1.msra.mxu0 %v292
      %339 = vmatprep.subr.mxu0 0.0
      %340 = vmatpush2.msra.mxu0 0.0
      %341 = vmatprep.subr.mxu0 0.0
      %342 = vmatpush2.msra.mxu0 0.0
      %343 = vmatprep.subr.mxu0 0.0
      %344 = vmatpush2.msra.mxu0 0.0
      %345 = vmatprep.subr.mxu0 0.0
      %346 = vmatpush2.msra.mxu0 0.0
      %347 = vmatprep.subr.mxu0 0.0
      %348 = vmatpush2.msra.mxu0 0.0
      %349 = vmatprep.subr.mxu0 0.0
      %350 = vmatpush2.msra.mxu0 0.0
      %351 = vmatprep.subr.mxu0 0.0
      %352 = vmatpush2.msra.mxu0 0.0
      %353 = vmatprep.subr.mxu0 0.0
      %354 = vmatpush2.msra.mxu0 0.0
      %355 = vmatprep.subr.mxu0 0.0
      %356 = vmatpush2.msra.mxu0 0.0
      %357 = vmatprep.subr.mxu0 0.0
      %358 = vmatpush2.msra.mxu0 0.0
      %359 = vmatprep.subr.mxu0 0.0
      %360 = vmatpush2.msra.mxu0 0.0
      %361 = vmatprep.subr.mxu0 0.0
      %362 = vmatpush2.msra.mxu0 0.0
      %363 = vmatprep.subr.mxu0 0.0
      %364 = vmatpush2.msra.mxu0 0.0
      %365 = vmatprep.subr.mxu0 0.0
      %366 = vmatpush2.msra.mxu0 0.0
      %367 = vmatprep.subr.mxu0 0.0
      %368 = vmatpush2.msra.mxu0 0.0
      %369 = vmatprep.subr.mxu0 0.0
      %370 = vmatpush2.msra.mxu0 0.0
      %371 = vmatprep.mubr.f32.mxu0 0.0
      %372 = vmatmul.mubr.f32.gmra.mxu0 %v305
      %v373 = vpop.f32.mrf.mxu0
      %v374 = vadd.f32 %v301, %v373
      %v375 = vpop.f32.mrf.mxu0
      %376 = vdwg.mxu0
      %v377 = vmax.f32 %v374, 0.0
      %v378 = vld [vmem:[%s5] sm:$0xff]
      %v379 = vld [vmem:[%s5 + $0x8] sm:$0xff]
      %v380 = vld [vmem:[%s5 + $0x10] sm:$0xff]
      %v381 = vld [vmem:[%s5 + $0x18] sm:$0xff]
      %v382 = vld [vmem:[%s6] sm:$0x1]
      %v384 = vlaneseq
      %v385 = vshrl.u32 %v384, 7
      %v386 = vsub.s32 0, %v385
      %v387 = vrot.slane %v382, %v386
      %v390 = vsel %vm303, %v377, 0
      %392 = vmatprep.subr.mxu0 0.0
      %393 = vmatpush1.msra.mxu0 0.0
      %394 = vmatprep.subr.mxu0 0.0
      %395 = vmatpush1.msra.mxu0 0.0
      %396 = vmatprep.subr.mxu0 0.0
      %397 = vmatpush1.msra.mxu0 0.0
      %398 = vmatprep.subr.mxu0 0.0
      %399 = vmatpush1.msra.mxu0 0.0
      %400 = vmatprep.subr.mxu0 0.0
      %401 = vmatpush1.msra.mxu0 0.0
      %402 = vmatprep.subr.mxu0 0.0
      %403 = vmatpush1.msra.mxu0 0.0
      %404 = vmatprep.subr.mxu0 0.0
      %405 = vmatpush1.msra.mxu0 0.0
      %406 = vmatprep.subr.mxu0 0.0
      %407 = vmatpush1.msra.mxu0 0.0
      %408 = vmatprep.subr.mxu0 0.0
      %409 = vmatpush1.msra.mxu0 0.0
      %410 = vmatprep.subr.mxu0 0.0
      %411 = vmatpush1.msra.mxu0 0.0
      %412 = vmatprep.subr.mxu0 0.0
      %413 = vmatpush1.msra.mxu0 0.0
      %414 = vmatprep.subr.mxu0 0.0
      %415 = vmatpush1.msra.mxu0 0.0
      %416 = vmatprep.subr.mxu0 0.0
      %417 = vmatpush1.msra.mxu0 %v381
      %418 = vmatprep.subr.mxu0 0.0
      %419 = vmatpush1.msra.mxu0 %v380
      %420 = vmatprep.subr.mxu0 0.0
      %421 = vmatpush1.msra.mxu0 %v379
      %422 = vmatprep.subr.mxu0 0.0
      %423 = vmatpush1.msra.mxu0 %v378
      %424 = vmatprep.subr.mxu0 0.0
      %425 = vmatpush2.msra.mxu0 0.0
      %426 = vmatprep.subr.mxu0 0.0
      %427 = vmatpush2.msra.mxu0 0.0
      %428 = vmatprep.subr.mxu0 0.0
      %429 = vmatpush2.msra.mxu0 0.0
      %430 = vmatprep.subr.mxu0 0.0
      %431 = vmatpush2.msra.mxu0 0.0
      %432 = vmatprep.subr.mxu0 0.0
      %433 = vmatpush2.msra.mxu0 0.0
      %434 = vmatprep.subr.mxu0 0.0
      %435 = vmatpush2.msra.mxu0 0.0
      %436 = vmatprep.subr.mxu0 0.0
      %437 = vmatpush2.msra.mxu0 0.0
      %438 = vmatprep.subr.mxu0 0.0
      %439 = vmatpush2.msra.mxu0 0.0
      %440 = vmatprep.subr.mxu0 0.0
      %441 = vmatpush2.msra.mxu0 0.0
      %442 = vmatprep.subr.mxu0 0.0
      %443 = vmatpush2.msra.mxu0 0.0
      %444 = vmatprep.subr.mxu0 0.0
      %445 = vmatpush2.msra.mxu0 0.0
      %446 = vmatprep.subr.mxu0 0.0
      %447 = vmatpush2.msra.mxu0 0.0
      %448 = vmatprep.subr.mxu0 0.0
      %449 = vmatpush2.msra.mxu0 0.0
      %450 = vmatprep.subr.mxu0 0.0
      %451 = vmatpush2.msra.mxu0 0.0
      %452 = vmatprep.subr.mxu0 0.0
      %453 = vmatpush2.msra.mxu0 0.0
      %454 = vmatprep.subr.mxu0 0.0
      %455 = vmatpush2.msra.mxu0 0.0
      %456 = vmatprep.mubr.f32.mxu0 0.0
      %457 = vmatmul.mubr.f32.gmra.mxu0 %v390
      %v458 = vpop.f32.mrf.mxu0
      %v459 = vadd.f32 %v387, %v458
      %v460 = vpop.f32.mrf.mxu0
      %461 = vdwg.mxu0
      %vm462 = vcmask 19456
      %463 = vst.msk [vmem:[#allocation6] sm:$0xf] %vm462, %v459
    $region41: #{tpu_custom_call.1} parent=1 // pred_fallthru
      _
    // Predicated region
    $region42: #{tpu_custom_call.1} parent=1 // pred_check
      _
    $region43: #{tpu_custom_call.1} parent=1 // pred_check_branch
      %465 = sbr.rel (0) target = $region45
    $region44: #{tpu_custom_call.1} parent=1 // pred_region
      %s467 = ssub.s32 64, 64
      %468 = vsyncadd [#allocation5], %s467
      %s470 = sshll.u32 [#allocation6], 4
      %s471 = int_to_ptr.vmem [resolvable:$true] %s470
      %473 = dma.vmem_to_hbm [thread:$0]  %s471, 64, %s7, [#allocation5]
    $region45: #{tpu_custom_call.1} parent=1 // pred_fallthru
      _
    // Predicated region
    $region46: #{tpu_custom_call.1} parent=1 // pred_check
      _
    $region47: #{tpu_custom_call.1} parent=1 // pred_check_branch
      %475 = sbr.rel (0) target = $region49
    $region48: #{tpu_custom_call.1} parent=1 // pred_region
      %476 = dma.done [#allocation5], 64
    $region49: #{tpu_custom_call.1} parent=1 // pred_fallthru
      _
    %477 = vsyncpa [#allocation4], 1
    %478 = vsyncpa [#allocation5], 1

</llo_original>
